<compile_context>
chip_gen: v7x
topology: tpu7x:2x2x1
jax: 0.10.0
libtpu: 0.0.40
codegen_flags: <defaults>
</compile_context>

<pallas_src>
import functools

import jax
import jax.numpy as jnp
from jax.experimental import pallas as pl
from jax.experimental.pallas import tpu as pltpu


def binary_encoding_kernel(x_ref, wb_ref, bb_ref, wd_ref, bd_ref, wc_ref,
                           tie_ref, out_ref, *, groups, k):
    """One batch tile of the BinaryEncoding forward.

    The batch->lane fold (factor F) is baked into the block-diagonal weights,
    so the kernel only sees wide, lane-dense operands:
      x_ref  : [TB, F*E]          activation tile (F batch rows folded into lanes)
      wb_ref : [F*E, F*H]         bottleneck weight (block-diag, pre-transposed)
      bb_ref : [1, F*H]
      wd_ref : [F*H, F*m*k]       decomposition weights (block-diag, fused over m)
      bd_ref : [1, F*m*k]
      wc_ref : [F*m*k, F*E]       composition weights (block-diag, fused over m)
      tie_ref: [F*m*k, F*m*k]     0/1 strictly-lower-triangular within each k-group
      out_ref: [TB, F*E]
    """
    x = x_ref[...]

    # bottleneck: Linear + Tanh (MXU with f32 accumulation, f32 elementwise)
    h = jnp.tanh(
        jnp.dot(x, wb_ref[...], preferred_element_type=jnp.float32)
        + bb_ref[...].astype(jnp.float32))                        # [TB, F*H] f32

    # fused decomposition: one wide matmul instead of F*m tiny ones
    logits = (
        jnp.dot(h.astype(wd_ref.dtype), wd_ref[...],
                preferred_element_type=jnp.float32)
        + bd_ref[...].astype(jnp.float32))                        # [TB, F*m*k] f32

    # Straight-through forward value: per-group one_hot(argmax(logits_group)).
    # softplus & softmax are strictly monotonic -> argmax unchanged (also removes
    # the log1p(exp) overflow hazard of the original code).
    # One cross-lane (XLU) reduce per group; the first-index tie-break matching
    # torch.max is done with a single MXU matmul against `tie_ref` instead of a
    # second XLU reduce per group.
    parts = []
    for g in range(groups):
        seg = logits[:, g * k:(g + 1) * k]                        # static lane slice
        smax = jnp.max(seg, axis=-1, keepdims=True)               # 1 reduce / group
        parts.append((seg >= smax).astype(tie_ref.dtype))         # 0/1 "is a max"
    eq = jnp.concatenate(parts, axis=-1)                          # [TB, F*m*k]
    # prior[:, j] = number of tied maxima earlier in j's group (0 for the first)
    prior = jnp.dot(eq, tie_ref[...], preferred_element_type=jnp.float32)
    d = jnp.where(prior < 0.5, eq, jnp.zeros_like(eq)).astype(wc_ref.dtype)

    # fused composition: one matmul == sum over the m (and F) groups
    out_ref[...] = jnp.dot(d, wc_ref[...],
                           preferred_element_type=jnp.float32).astype(out_ref.dtype)


def _block_diag(w, f):
    if f == 1:
        return w
    return jax.scipy.linalg.block_diag(*([w] * f))


def choose_fold(embedding_dim):
    """Fold factor packing consecutive batch rows into lanes so the activation /
    output last dim becomes 128-wide (lane-dense).  1 if E doesn't divide 128."""
    if embedding_dim >= 128 or 128 % embedding_dim != 0:
        return 1
    return 128 // embedding_dim


def prepare_params(wb, bb, wd, bd, wc, *, fold=1, matmul_dtype=None):
    """One-time parameter re-layout (PyTorch [out,in] -> row-major matmul layout)
    plus the batch->lane fold.  Done once at model setup; the per-call forward
    pays no transpose / block-diag construction traffic.

      wb: [H, E]    -> block_diag(fold x [E, H])    = [fold*E,   fold*H]
      bb: [H]       -> tiled                         = [1,        fold*H]
      wd: [m, k, H] -> block_diag(fold x [H, m*k])   = [fold*H,   fold*m*k]
      bd: [m, k]    -> tiled                         = [1,        fold*m*k]
      wc: [m, E, k] -> block_diag(fold x [m*k, E])   = [fold*m*k, fold*E]
      tie           : 0/1, strictly lower triangular within each k-sized group.

    `matmul_dtype` (e.g. jnp.bfloat16 on v5e/v6e/v7x) narrows ONLY the MXU
    operands; bias / tanh / compare math stays f32 inside the kernel.
    """
    m, k, H = wd.shape
    E = wb.shape[1]
    wb_t = jnp.transpose(wb, (1, 0))                            # [E, H]
    wd_all = jnp.transpose(wd, (2, 0, 1)).reshape(H, m * k)     # [H, m*k]
    wc_all = jnp.transpose(wc, (0, 2, 1)).reshape(m * k, E)     # [m*k, E]

    wb_bd = _block_diag(wb_t, fold)
    wd_bd = _block_diag(wd_all, fold)
    wc_bd = _block_diag(wc_all, fold)
    bb_row = jnp.tile(bb.reshape(1, H), (1, fold)).astype(jnp.float32)
    bd_row = jnp.tile(bd.reshape(1, m * k), (1, fold)).astype(jnp.float32)

    n = fold * m * k
    idx = jnp.arange(n)
    grp = idx // k
    tie = ((grp[:, None] == grp[None, :]) & (idx[:, None] < idx[None, :]))

    if matmul_dtype is None:
        matmul_dtype = wb.dtype
    return (wb_bd.astype(matmul_dtype), bb_row,
            wd_bd.astype(matmul_dtype), bd_row,
            wc_bd.astype(matmul_dtype), tie.astype(matmul_dtype))


def _round_up(x, n):
    return -(-x // n) * n


def _choose_tile_b(rows, lanes, itemsize, tile_b=None, min_steps=4,
                   act_vmem_budget=16 * 1024 * 1024):
    """Pick a legal, VMEM-safe batch tile.

    * 4 double-buffered activation tiles (2 in + 2 out) of rows*lanes*itemsize
      must fit `act_vmem_budget` (safe on v7x's 64 MiB VMEM with headroom).
    * keep >= min_steps grid steps when possible (2 TensorCores x 2 steps) so
      megacore sharding and double-buffering have work.
    * round to a sublane multiple (8 for 4-byte, 16 for 2-byte dtypes) so the
      BlockSpec is legal for any rows/tile_b combination; a full-array block is
      always legal.
    """
    sub = 16 if itemsize < 4 else 8
    if rows <= sub:
        return rows                                    # full-array block
    target = tile_b if tile_b is not None else 8192    # small E -> big tiles amortize
                                                       # the ~0.35us per-step overhead
    tb = min(target, rows, max(sub, act_vmem_budget // (4 * lanes * itemsize)))
    if rows >= min_steps * sub:
        tb = min(tb, _round_up(pl.cdiv(rows, min_steps), sub))
    tb = max(sub, (tb // sub) * sub)
    return rows if tb >= rows else tb


@functools.partial(jax.jit, static_argnames=("m", "k", "fold", "tile_b"))
def binary_encoding_forward(x, wb_bd, bb_row, wd_bd, bd_row, wc_bd, tie,
                            *, m, k, fold=1, tile_b=None):
    """x: [B, E]; weights as produced by prepare_params(..., fold=fold)."""
    B, E = x.shape
    groups = fold * m
    lanes = fold * E                      # lane-dense last dim (128 for E=32, fold=4)

    # batch -> lane fold: a free row-major reshape (no copy, no E zero-padding,
    # no extra HBM traffic).  Only pad the batch (cheap) if B % fold != 0.
    pad = (-B) % fold
    xf = x if pad == 0 else jnp.concatenate(
        [x, jnp.zeros((pad, E), x.dtype)], axis=0)
    rows = (B + pad) // fold
    xf = xf.reshape(rows, lanes)

    tb = _choose_tile_b(rows, lanes, jnp.dtype(x.dtype).itemsize, tile_b)
    grid = (pl.cdiv(rows, tb),)

    kernel = functools.partial(binary_encoding_kernel, groups=groups, k=k)

    def resident(arr):
        # same block every grid step -> loaded once, kept resident in VMEM
        return pl.BlockSpec(arr.shape, lambda b: (0,) * arr.ndim)

    # NOTE: if rows % tb != 0 the last tile's tail rows compute garbage (bounded
    # by tanh / exact one-hot), but Pallas masks the out-of-bounds output writes;
    # explicit batch-pad rows are sliced off below.  Do not break this when/if
    # refactoring to manual DMA.
    out_f = pl.pallas_call(
        kernel,
        out_shape=jax.ShapeDtypeStruct((rows, lanes), x.dtype),
        grid=grid,
        in_specs=[
            pl.BlockSpec((tb, lanes), lambda b: (b, 0)),   # x tile (double-buffered)
            resident(wb_bd), resident(bb_row),
            resident(wd_bd), resident(bd_row),
            resident(wc_bd), resident(tie),
        ],
        out_specs=pl.BlockSpec((tb, lanes), lambda b: (b, 0)),
        compiler_params=pltpu.CompilerParams(
            dimension_semantics=("parallel",),     # megacore-shard batch on v7x
            vmem_limit_bytes=32 * 1024 * 1024,     # tiles budgeted to ~16 MiB + weights
        ),
    )(xf, wb_bd, bb_row, wd_bd, bd_row, wc_bd, tie)

    out = out_f.reshape(B + pad, E)
    return out if pad == 0 else out[:B]


def reference_forward(x, wb, bb, wd, bd, wc):
    """Pure-JAX reference mirroring the PyTorch forward values (incl. softplus/softmax)."""
    h = jnp.tanh(x @ wb.T + bb)                                   # [B, H]
    out = jnp.zeros((x.shape[0], wc.shape[1]), jnp.float32)
    m, k, _ = wd.shape
    for i in range(m):
        logits = h @ wd[i].T + bd[i]                              # [B, k]
        a = jax.nn.softplus(logits)
        y = jax.nn.softmax(a, axis=-1)
        ind = jnp.argmax(y, axis=-1)
        d = jax.nn.one_hot(ind, k, dtype=jnp.float32)             # forward value == y_hard
        out = out + d @ wc[i].T
    return out


if __name__ == "__main__":
    # module hyper-params (small, consistent with __init__): hidden = m*k//2
    embedding_dim = 32
    m = 4
    k = 16
    hidden = (m * k) // 2  # 32
    batch = 8

    key = jax.random.PRNGKey(0)
    kx, kwb, kbb, kwd, kbd, kwc = jax.random.split(key, 6)

    # deterministic init, mirroring p.data.uniform_(-0.1, 0.1)
    x = jax.random.normal(kx, (batch, embedding_dim), jnp.float32)
    wb = jax.random.uniform(kwb, (hidden, embedding_dim), jnp.float32, -0.1, 0.1)
    bb = jax.random.uniform(kbb, (hidden,), jnp.float32, -0.1, 0.1)
    wd = jax.random.uniform(kwd, (m, k, hidden), jnp.float32, -0.1, 0.1)
    bd = jax.random.uniform(kbd, (m, k), jnp.float32, -0.1, 0.1)
    wc = jax.random.uniform(kwc, (m, embedding_dim, k), jnp.float32, -0.1, 0.1)

    fold = choose_fold(embedding_dim)            # 4: pack 4 batch rows -> 128 lanes

    # f32 path: exact check against the pure-JAX reference
    params = prepare_params(wb, bb, wd, bd, wc, fold=fold)
    params = jax.tree_util.tree_map(jax.block_until_ready, params)
    out = binary_encoding_forward(x, *params, m=m, k=k, fold=fold)
    out = jax.block_until_ready(out)

    ref = reference_forward(x, wb, bb, wd, bd, wc)
    assert out.shape == (batch, embedding_dim)
    assert jnp.allclose(out, ref, atol=1e-5, rtol=1e-5), "mismatch vs reference"

    # bf16-MXU-operand path (the v5e/v6e recommendation): matmul operands narrow
    # to bf16, all bias/tanh/compare math stays f32 in-kernel.  Near-tie argmax
    # flips make an exact comparison inappropriate, so this is a smoke check.
    params_bf16 = prepare_params(wb, bb, wd, bd, wc, fold=fold,
                                 matmul_dtype=jnp.bfloat16)
    out_bf16 = binary_encoding_forward(x.astype(jnp.bfloat16), *params_bf16,
                                       m=m, k=k, fold=fold)
    out_bf16 = jax.block_until_ready(out_bf16)
    assert out_bf16.shape == (batch, embedding_dim)
    assert bool(jnp.all(jnp.isfinite(out_bf16.astype(jnp.float32))))

    print("KERNEL_OK")
</pallas_src>

<mosaic_0001>
module attributes {stable_mosaic.version = 11 : i64} {
  func.func @binary_encoding_kernel(%arg0: i32, %arg1: memref<2x128xf32, #tpu.memory_space<vmem>>, %arg2: memref<128x128xf32, #tpu.memory_space<vmem>>, %arg3: memref<1x128xf32, #tpu.memory_space<vmem>>, %arg4: memref<128x256xf32, #tpu.memory_space<vmem>>, %arg5: memref<1x256xf32, #tpu.memory_space<vmem>>, %arg6: memref<256x128xf32, #tpu.memory_space<vmem>>, %arg7: memref<256x256xf32, #tpu.memory_space<vmem>>, %arg8: memref<2x128xf32, #tpu.memory_space<vmem>>) attributes {dimension_semantics = [#tpu.dimension_semantics<parallel>], iteration_bounds = array<i64: 1>, scalar_prefetch = 0 : i64, scratch_operands = 0 : i64, tpu.core_type = #tpu.core_type<tc>, window_params = [{transform_indices = @transform_0, window_bounds = array<i64: 2, 128>}, {pipeline_mode = #tpu.pipeline_mode<synchronous>, transform_indices = @transform_1, window_bounds = array<i64: 128, 128>}, {pipeline_mode = #tpu.pipeline_mode<synchronous>, transform_indices = @transform_2, window_bounds = array<i64: 1, 128>}, {pipeline_mode = #tpu.pipeline_mode<synchronous>, transform_indices = @transform_3, window_bounds = array<i64: 128, 256>}, {pipeline_mode = #tpu.pipeline_mode<synchronous>, transform_indices = @transform_4, window_bounds = array<i64: 1, 256>}, {pipeline_mode = #tpu.pipeline_mode<synchronous>, transform_indices = @transform_5, window_bounds = array<i64: 256, 128>}, {pipeline_mode = #tpu.pipeline_mode<synchronous>, transform_indices = @transform_6, window_bounds = array<i64: 256, 256>}, {transform_indices = @transform_7, window_bounds = array<i64: 2, 128>}]} {
    %c0 = arith.constant 0 : index
    %c0_0 = arith.constant 0 : index
    %0 = vector.load %arg1[%c0, %c0_0] : memref<2x128xf32, #tpu.memory_space<vmem>>, vector<2x128xf32>
    %c0_1 = arith.constant 0 : index
    %c0_2 = arith.constant 0 : index
    %1 = vector.load %arg2[%c0_1, %c0_2] : memref<128x128xf32, #tpu.memory_space<vmem>>, vector<128x128xf32>
    %cst = arith.constant dense<0.000000e+00> : vector<2x128xf32>
    %2 = tpu.matmul %0, %1, %cst {dimension_numbers = #tpu.dot_dimension_numbers<[1], [0], [0], [1], [0, 0, 1, 1], [], []>} : vector<2x128xf32>, vector<128x128xf32>, vector<2x128xf32> -> vector<2x128xf32>
    %c0_3 = arith.constant 0 : index
    %c0_4 = arith.constant 0 : index
    %3 = vector.load %arg3[%c0_3, %c0_4] : memref<1x128xf32, #tpu.memory_space<vmem>>, vector<1x128xf32>
    %4 = vector.broadcast %3 : vector<1x128xf32> to vector<2x128xf32>
    %5 = arith.addf %2, %4 : vector<2x128xf32>
    %6 = math.tanh %5 : vector<2x128xf32>
    %c0_5 = arith.constant 0 : index
    %c0_6 = arith.constant 0 : index
    %7 = vector.load %arg4[%c0_5, %c0_6] : memref<128x256xf32, #tpu.memory_space<vmem>>, vector<128x256xf32>
    %cst_7 = arith.constant dense<0.000000e+00> : vector<2x256xf32>
    %8 = tpu.matmul %6, %7, %cst_7 {dimension_numbers = #tpu.dot_dimension_numbers<[1], [0], [0], [1], [0, 0, 1, 1], [], []>} : vector<2x128xf32>, vector<128x256xf32>, vector<2x256xf32> -> vector<2x256xf32>
    %c0_8 = arith.constant 0 : index
    %c0_9 = arith.constant 0 : index
    %9 = vector.load %arg5[%c0_8, %c0_9] : memref<1x256xf32, #tpu.memory_space<vmem>>, vector<1x256xf32>
    %10 = vector.broadcast %9 : vector<1x256xf32> to vector<2x256xf32>
    %11 = arith.addf %8, %10 : vector<2x256xf32>
    %12 = vector.extract_strided_slice %11 {offsets = [0, 0], sizes = [2, 16], strides = [1, 1]} : vector<2x256xf32> to vector<2x16xf32>
    %cst_10 = arith.constant dense<0xFF800000> : vector<2xf32>
    %13 = vector.multi_reduction <maximumf>, %12, %cst_10 [1] : vector<2x16xf32> to vector<2xf32>
    %14 = vector.shape_cast %13 : vector<2xf32> to vector<2x1xf32>
    %15 = vector.broadcast %14 : vector<2x1xf32> to vector<2x16xf32>
    %16 = arith.cmpf oge, %12, %15 : vector<2x16xf32>
    %17 = arith.extui %16 : vector<2x16xi1> to vector<2x16xi32>
    %18 = arith.sitofp %17 : vector<2x16xi32> to vector<2x16xf32>
    %19 = vector.extract_strided_slice %11 {offsets = [0, 16], sizes = [2, 16], strides = [1, 1]} : vector<2x256xf32> to vector<2x16xf32>
    %cst_11 = arith.constant dense<0xFF800000> : vector<2xf32>
    %20 = vector.multi_reduction <maximumf>, %19, %cst_11 [1] : vector<2x16xf32> to vector<2xf32>
    %21 = vector.shape_cast %20 : vector<2xf32> to vector<2x1xf32>
    %22 = vector.broadcast %21 : vector<2x1xf32> to vector<2x16xf32>
    %23 = arith.cmpf oge, %19, %22 : vector<2x16xf32>
    %24 = arith.extui %23 : vector<2x16xi1> to vector<2x16xi32>
    %25 = arith.sitofp %24 : vector<2x16xi32> to vector<2x16xf32>
    %26 = vector.extract_strided_slice %11 {offsets = [0, 32], sizes = [2, 16], strides = [1, 1]} : vector<2x256xf32> to vector<2x16xf32>
    %cst_12 = arith.constant dense<0xFF800000> : vector<2xf32>
    %27 = vector.multi_reduction <maximumf>, %26, %cst_12 [1] : vector<2x16xf32> to vector<2xf32>
    %28 = vector.shape_cast %27 : vector<2xf32> to vector<2x1xf32>
    %29 = vector.broadcast %28 : vector<2x1xf32> to vector<2x16xf32>
    %30 = arith.cmpf oge, %26, %29 : vector<2x16xf32>
    %31 = arith.extui %30 : vector<2x16xi1> to vector<2x16xi32>
    %32 = arith.sitofp %31 : vector<2x16xi32> to vector<2x16xf32>
    %33 = vector.extract_strided_slice %11 {offsets = [0, 48], sizes = [2, 16], strides = [1, 1]} : vector<2x256xf32> to vector<2x16xf32>
    %cst_13 = arith.constant dense<0xFF800000> : vector<2xf32>
    %34 = vector.multi_reduction <maximumf>, %33, %cst_13 [1] : vector<2x16xf32> to vector<2xf32>
    %35 = vector.shape_cast %34 : vector<2xf32> to vector<2x1xf32>
    %36 = vector.broadcast %35 : vector<2x1xf32> to vector<2x16xf32>
    %37 = arith.cmpf oge, %33, %36 : vector<2x16xf32>
    %38 = arith.extui %37 : vector<2x16xi1> to vector<2x16xi32>
    %39 = arith.sitofp %38 : vector<2x16xi32> to vector<2x16xf32>
    %40 = vector.extract_strided_slice %11 {offsets = [0, 64], sizes = [2, 16], strides = [1, 1]} : vector<2x256xf32> to vector<2x16xf32>
    %cst_14 = arith.constant dense<0xFF800000> : vector<2xf32>
    %41 = vector.multi_reduction <maximumf>, %40, %cst_14 [1] : vector<2x16xf32> to vector<2xf32>
    %42 = vector.shape_cast %41 : vector<2xf32> to vector<2x1xf32>
    %43 = vector.broadcast %42 : vector<2x1xf32> to vector<2x16xf32>
    %44 = arith.cmpf oge, %40, %43 : vector<2x16xf32>
    %45 = arith.extui %44 : vector<2x16xi1> to vector<2x16xi32>
    %46 = arith.sitofp %45 : vector<2x16xi32> to vector<2x16xf32>
    %47 = vector.extract_strided_slice %11 {offsets = [0, 80], sizes = [2, 16], strides = [1, 1]} : vector<2x256xf32> to vector<2x16xf32>
    %cst_15 = arith.constant dense<0xFF800000> : vector<2xf32>
    %48 = vector.multi_reduction <maximumf>, %47, %cst_15 [1] : vector<2x16xf32> to vector<2xf32>
    %49 = vector.shape_cast %48 : vector<2xf32> to vector<2x1xf32>
    %50 = vector.broadcast %49 : vector<2x1xf32> to vector<2x16xf32>
    %51 = arith.cmpf oge, %47, %50 : vector<2x16xf32>
    %52 = arith.extui %51 : vector<2x16xi1> to vector<2x16xi32>
    %53 = arith.sitofp %52 : vector<2x16xi32> to vector<2x16xf32>
    %54 = vector.extract_strided_slice %11 {offsets = [0, 96], sizes = [2, 16], strides = [1, 1]} : vector<2x256xf32> to vector<2x16xf32>
    %cst_16 = arith.constant dense<0xFF800000> : vector<2xf32>
    %55 = vector.multi_reduction <maximumf>, %54, %cst_16 [1] : vector<2x16xf32> to vector<2xf32>
    %56 = vector.shape_cast %55 : vector<2xf32> to vector<2x1xf32>
    %57 = vector.broadcast %56 : vector<2x1xf32> to vector<2x16xf32>
    %58 = arith.cmpf oge, %54, %57 : vector<2x16xf32>
    %59 = arith.extui %58 : vector<2x16xi1> to vector<2x16xi32>
    %60 = arith.sitofp %59 : vector<2x16xi32> to vector<2x16xf32>
    %61 = vector.extract_strided_slice %11 {offsets = [0, 112], sizes = [2, 16], strides = [1, 1]} : vector<2x256xf32> to vector<2x16xf32>
    %cst_17 = arith.constant dense<0xFF800000> : vector<2xf32>
    %62 = vector.multi_reduction <maximumf>, %61, %cst_17 [1] : vector<2x16xf32> to vector<2xf32>
    %63 = vector.shape_cast %62 : vector<2xf32> to vector<2x1xf32>
    %64 = vector.broadcast %63 : vector<2x1xf32> to vector<2x16xf32>
    %65 = arith.cmpf oge, %61, %64 : vector<2x16xf32>
    %66 = arith.extui %65 : vector<2x16xi1> to vector<2x16xi32>
    %67 = arith.sitofp %66 : vector<2x16xi32> to vector<2x16xf32>
    %68 = vector.extract_strided_slice %11 {offsets = [0, 128], sizes = [2, 16], strides = [1, 1]} : vector<2x256xf32> to vector<2x16xf32>
    %cst_18 = arith.constant dense<0xFF800000> : vector<2xf32>
    %69 = vector.multi_reduction <maximumf>, %68, %cst_18 [1] : vector<2x16xf32> to vector<2xf32>
    %70 = vector.shape_cast %69 : vector<2xf32> to vector<2x1xf32>
    %71 = vector.broadcast %70 : vector<2x1xf32> to vector<2x16xf32>
    %72 = arith.cmpf oge, %68, %71 : vector<2x16xf32>
    %73 = arith.extui %72 : vector<2x16xi1> to vector<2x16xi32>
    %74 = arith.sitofp %73 : vector<2x16xi32> to vector<2x16xf32>
    %75 = vector.extract_strided_slice %11 {offsets = [0, 144], sizes = [2, 16], strides = [1, 1]} : vector<2x256xf32> to vector<2x16xf32>
    %cst_19 = arith.constant dense<0xFF800000> : vector<2xf32>
    %76 = vector.multi_reduction <maximumf>, %75, %cst_19 [1] : vector<2x16xf32> to vector<2xf32>
    %77 = vector.shape_cast %76 : vector<2xf32> to vector<2x1xf32>
    %78 = vector.broadcast %77 : vector<2x1xf32> to vector<2x16xf32>
    %79 = arith.cmpf oge, %75, %78 : vector<2x16xf32>
    %80 = arith.extui %79 : vector<2x16xi1> to vector<2x16xi32>
    %81 = arith.sitofp %80 : vector<2x16xi32> to vector<2x16xf32>
    %82 = vector.extract_strided_slice %11 {offsets = [0, 160], sizes = [2, 16], strides = [1, 1]} : vector<2x256xf32> to vector<2x16xf32>
    %cst_20 = arith.constant dense<0xFF800000> : vector<2xf32>
    %83 = vector.multi_reduction <maximumf>, %82, %cst_20 [1] : vector<2x16xf32> to vector<2xf32>
    %84 = vector.shape_cast %83 : vector<2xf32> to vector<2x1xf32>
    %85 = vector.broadcast %84 : vector<2x1xf32> to vector<2x16xf32>
    %86 = arith.cmpf oge, %82, %85 : vector<2x16xf32>
    %87 = arith.extui %86 : vector<2x16xi1> to vector<2x16xi32>
    %88 = arith.sitofp %87 : vector<2x16xi32> to vector<2x16xf32>
    %89 = vector.extract_strided_slice %11 {offsets = [0, 176], sizes = [2, 16], strides = [1, 1]} : vector<2x256xf32> to vector<2x16xf32>
    %cst_21 = arith.constant dense<0xFF800000> : vector<2xf32>
    %90 = vector.multi_reduction <maximumf>, %89, %cst_21 [1] : vector<2x16xf32> to vector<2xf32>
    %91 = vector.shape_cast %90 : vector<2xf32> to vector<2x1xf32>
    %92 = vector.broadcast %91 : vector<2x1xf32> to vector<2x16xf32>
    %93 = arith.cmpf oge, %89, %92 : vector<2x16xf32>
    %94 = arith.extui %93 : vector<2x16xi1> to vector<2x16xi32>
    %95 = arith.sitofp %94 : vector<2x16xi32> to vector<2x16xf32>
    %96 = vector.extract_strided_slice %11 {offsets = [0, 192], sizes = [2, 16], strides = [1, 1]} : vector<2x256xf32> to vector<2x16xf32>
    %cst_22 = arith.constant dense<0xFF800000> : vector<2xf32>
    %97 = vector.multi_reduction <maximumf>, %96, %cst_22 [1] : vector<2x16xf32> to vector<2xf32>
    %98 = vector.shape_cast %97 : vector<2xf32> to vector<2x1xf32>
    %99 = vector.broadcast %98 : vector<2x1xf32> to vector<2x16xf32>
    %100 = arith.cmpf oge, %96, %99 : vector<2x16xf32>
    %101 = arith.extui %100 : vector<2x16xi1> to vector<2x16xi32>
    %102 = arith.sitofp %101 : vector<2x16xi32> to vector<2x16xf32>
    %103 = vector.extract_strided_slice %11 {offsets = [0, 208], sizes = [2, 16], strides = [1, 1]} : vector<2x256xf32> to vector<2x16xf32>
    %cst_23 = arith.constant dense<0xFF800000> : vector<2xf32>
    %104 = vector.multi_reduction <maximumf>, %103, %cst_23 [1] : vector<2x16xf32> to vector<2xf32>
    %105 = vector.shape_cast %104 : vector<2xf32> to vector<2x1xf32>
    %106 = vector.broadcast %105 : vector<2x1xf32> to vector<2x16xf32>
    %107 = arith.cmpf oge, %103, %106 : vector<2x16xf32>
    %108 = arith.extui %107 : vector<2x16xi1> to vector<2x16xi32>
    %109 = arith.sitofp %108 : vector<2x16xi32> to vector<2x16xf32>
    %110 = vector.extract_strided_slice %11 {offsets = [0, 224], sizes = [2, 16], strides = [1, 1]} : vector<2x256xf32> to vector<2x16xf32>
    %cst_24 = arith.constant dense<0xFF800000> : vector<2xf32>
    %111 = vector.multi_reduction <maximumf>, %110, %cst_24 [1] : vector<2x16xf32> to vector<2xf32>
    %112 = vector.shape_cast %111 : vector<2xf32> to vector<2x1xf32>
    %113 = vector.broadcast %112 : vector<2x1xf32> to vector<2x16xf32>
    %114 = arith.cmpf oge, %110, %113 : vector<2x16xf32>
    %115 = arith.extui %114 : vector<2x16xi1> to vector<2x16xi32>
    %116 = arith.sitofp %115 : vector<2x16xi32> to vector<2x16xf32>
    %117 = vector.extract_strided_slice %11 {offsets = [0, 240], sizes = [2, 16], strides = [1, 1]} : vector<2x256xf32> to vector<2x16xf32>
    %cst_25 = arith.constant dense<0xFF800000> : vector<2xf32>
    %118 = vector.multi_reduction <maximumf>, %117, %cst_25 [1] : vector<2x16xf32> to vector<2xf32>
    %119 = vector.shape_cast %118 : vector<2xf32> to vector<2x1xf32>
    %120 = vector.broadcast %119 : vector<2x1xf32> to vector<2x16xf32>
    %121 = arith.cmpf oge, %117, %120 : vector<2x16xf32>
    %122 = arith.extui %121 : vector<2x16xi1> to vector<2x16xi32>
    %123 = arith.sitofp %122 : vector<2x16xi32> to vector<2x16xf32>
    %124 = tpu.concatenate %18, %25, %32, %39, %46, %53, %60, %67, %74, %81, %88, %95, %102, %109, %116, %123 in 1 : vector<2x16xf32>, vector<2x16xf32>, vector<2x16xf32>, vector<2x16xf32>, vector<2x16xf32>, vector<2x16xf32>, vector<2x16xf32>, vector<2x16xf32>, vector<2x16xf32>, vector<2x16xf32>, vector<2x16xf32>, vector<2x16xf32>, vector<2x16xf32>, vector<2x16xf32>, vector<2x16xf32>, vector<2x16xf32> -> vector<2x256xf32>
    %c0_26 = arith.constant 0 : index
    %c0_27 = arith.constant 0 : index
    %125 = vector.load %arg7[%c0_26, %c0_27] : memref<256x256xf32, #tpu.memory_space<vmem>>, vector<256x256xf32>
    %cst_28 = arith.constant dense<0.000000e+00> : vector<2x256xf32>
    %126 = tpu.matmul %124, %125, %cst_28 {dimension_numbers = #tpu.dot_dimension_numbers<[1], [0], [0], [1], [0, 0, 1, 1], [], []>} : vector<2x256xf32>, vector<256x256xf32>, vector<2x256xf32> -> vector<2x256xf32>
    %cst_29 = arith.constant 5.000000e-01 : f32
    %127 = vector.broadcast %cst_29 : f32 to vector<2x256xf32>
    %128 = arith.cmpf olt, %126, %127 : vector<2x256xf32>
    %cst_30 = arith.constant 0.000000e+00 : f32
    %129 = vector.broadcast %cst_30 : f32 to vector<2x256xf32>
    %130 = arith.select %128, %124, %129 : vector<2x256xi1>, vector<2x256xf32>
    %c0_31 = arith.constant 0 : index
    %c0_32 = arith.constant 0 : index
    %131 = vector.load %arg6[%c0_31, %c0_32] : memref<256x128xf32, #tpu.memory_space<vmem>>, vector<256x128xf32>
    %cst_33 = arith.constant dense<0.000000e+00> : vector<2x128xf32>
    %132 = tpu.matmul %130, %131, %cst_33 {dimension_numbers = #tpu.dot_dimension_numbers<[1], [0], [0], [1], [0, 0, 1, 1], [], []>} : vector<2x256xf32>, vector<256x128xf32>, vector<2x128xf32> -> vector<2x128xf32>
    %c0_34 = arith.constant 0 : index
    %c0_35 = arith.constant 0 : index
    %133 = vector.load %arg8[%c0_34, %c0_35] : memref<2x128xf32, #tpu.memory_space<vmem>>, vector<2x128xf32>
    tpu.vector_store %arg8[%c0_34, %c0_35], %132 {strides = array<i32>} : memref<2x128xf32, #tpu.memory_space<vmem>>, vector<2x128xf32>,
    return
  }
  func.func @transform_0(%arg0: i32) -> (i32, i32) {
    %c0_i32 = arith.constant 0 : i32
    %c0_i32_0 = arith.constant 0 : i32
    return %arg0, %c0_i32 : i32, i32
  }
  func.func @transform_1(%arg0: i32) -> (i32, i32) {
    %c0_i32 = arith.constant 0 : i32
    %c0_i32_0 = arith.constant 0 : i32
    %c0_i32_1 = arith.constant 0 : i32
    return %c0_i32, %c0_i32_0 : i32, i32
  }
  func.func @transform_2(%arg0: i32) -> (i32, i32) {
    %c0_i32 = arith.constant 0 : i32
    %c0_i32_0 = arith.constant 0 : i32
    %c0_i32_1 = arith.constant 0 : i32
    return %c0_i32, %c0_i32_0 : i32, i32
  }
  func.func @transform_3(%arg0: i32) -> (i32, i32) {
    %c0_i32 = arith.constant 0 : i32
    %c0_i32_0 = arith.constant 0 : i32
    %c0_i32_1 = arith.constant 0 : i32
    return %c0_i32, %c0_i32_0 : i32, i32
  }
  func.func @transform_4(%arg0: i32) -> (i32, i32) {
    %c0_i32 = arith.constant 0 : i32
    %c0_i32_0 = arith.constant 0 : i32
    %c0_i32_1 = arith.constant 0 : i32
    return %c0_i32, %c0_i32_0 : i32, i32
  }
  func.func @transform_5(%arg0: i32) -> (i32, i32) {
    %c0_i32 = arith.constant 0 : i32
    %c0_i32_0 = arith.constant 0 : i32
    %c0_i32_1 = arith.constant 0 : i32
    return %c0_i32, %c0_i32_0 : i32, i32
  }
  func.func @transform_6(%arg0: i32) -> (i32, i32) {
    %c0_i32 = arith.constant 0 : i32
    %c0_i32_0 = arith.constant 0 : i32
    %c0_i32_1 = arith.constant 0 : i32
    return %c0_i32, %c0_i32_0 : i32, i32
  }
  func.func @transform_7(%arg0: i32) -> (i32, i32) {
    %c0_i32 = arith.constant 0 : i32
    %c0_i32_0 = arith.constant 0 : i32
    return %arg0, %c0_i32 : i32, i32
  }
}

</mosaic_0001>

<llo_original>
// kernel: binary_encoding_forward.1
$region0: #{binary_encoding_forward.1}
  #allocation0 [shape = 'u32[]', space=smem, size = 0x4, offset = 0x4, fixed_abs, tag = 'smem constant byte address 0x4 - core index']
  #allocation1 [shape = 'u32[144,128]{1,0:T(1,128)}', space=vmem, size = 0x12000, scoped, tag = 'internal scratch']
  %s0 = inlined_call_operand.vmem [shape: f32[2,128], index: 0, kind: input, shape index: {}]
  %s1 = inlined_call_operand.hbm [shape: f32[128,128], index: 1, kind: input, shape index: {}]
  %s2 = inlined_call_operand.vmem [shape: f32[1,128], index: 2, kind: input, shape index: {}]
  %s3 = inlined_call_operand.hbm [shape: f32[128,256], index: 3, kind: input, shape index: {}]
  %s4 = inlined_call_operand.vmem [shape: f32[1,256], index: 4, kind: input, shape index: {}]
  %s5 = inlined_call_operand.hbm [shape: f32[256,128], index: 5, kind: input, shape index: {}]
  %s6 = inlined_call_operand.hbm [shape: f32[256,256], index: 6, kind: input, shape index: {}]
  %s7 = inlined_call_operand.vmem [shape: f32[2,128], index: 7, kind: output, shape index: {}]
  %s8 = sld [smem:[#allocation0]]
  $region54: #{binary_encoding_forward.1} parent=0
    _
  %s10 = ssub.s32 1, %s8
  %s11 = scalar_select 0, %s10, %s8
  $region1: #{binary_encoding_forward.1} parent=0
    #allocation2 [shape = 'u8[65536]{0}', space=vmem, size = 0x10000, scoped, tag = 'input window, operand 1, single buffered']
    #allocation3 [shape = 's32[1]{0}', space=sflag, size = 0x4, scoped, tag = 'scoped memory for binary_encoding_forward.1']
    #allocation4 [shape = 'u8[131072]{0}', space=vmem, size = 0x20000, scoped, tag = 'input window, operand 3, single buffered']
    #allocation5 [shape = 's32[1]{0}', space=sflag, size = 0x4, scoped, tag = 'scoped memory for binary_encoding_forward.1']
    #allocation6 [shape = 'u8[131072]{0}', space=vmem, size = 0x20000, scoped, tag = 'input window, operand 5, single buffered']
    #allocation7 [shape = 'u8[262144]{0}', space=vmem, size = 0x40000, scoped, tag = 'input window, operand 6, single buffered']
    #allocation8 [shape = 's32[1]{0}', space=sflag, size = 0x4, scoped, tag = 'scoped memory for binary_encoding_forward.1']
    %12 = vsyncpa [#allocation3], 0
    %13 = vsyncpa [#allocation5], 0
    %14 = vsyncpa [#allocation8], 0
    // Predicated region
    $region2: #{binary_encoding_forward.1} parent=1 // pred_check
      _
    $region3: #{binary_encoding_forward.1} parent=1 // pred_check_branch
      %16 = sbr.rel (0) target = $region5
    $region4: #{binary_encoding_forward.1} parent=1 // pred_region
      _
    $region5: #{binary_encoding_forward.1} parent=1 // pred_fallthru
      _
    // Predicated region
    $region6: #{binary_encoding_forward.1} parent=1 // pred_check
      _
    $region7: #{binary_encoding_forward.1} parent=1 // pred_check_branch
      %18 = sbr.rel (0) target = $region9
    $region8: #{binary_encoding_forward.1} parent=1 // pred_region
      %s20 = ssub.s32 2048, 2048
      %21 = vsyncadd [#allocation3], %s20
      %s22 = sshll.u32 [#allocation2], 4
      %s23 = int_to_ptr.vmem [resolvable:$true] %s22
      %28 = dma.hbm_to_vmem [thread:$0]  %s1, 2048, %s23, [#allocation3], 128, 128, 8
    $region9: #{binary_encoding_forward.1} parent=1 // pred_fallthru
      _
    // Predicated region
    $region10: #{binary_encoding_forward.1} parent=1 // pred_check
      _
    $region11: #{binary_encoding_forward.1} parent=1 // pred_check_branch
      %30 = sbr.rel (0) target = $region13
    $region12: #{binary_encoding_forward.1} parent=1 // pred_region
      _
    $region13: #{binary_encoding_forward.1} parent=1 // pred_fallthru
      _
    // Predicated region
    $region14: #{binary_encoding_forward.1} parent=1 // pred_check
      _
    $region15: #{binary_encoding_forward.1} parent=1 // pred_check_branch
      %32 = sbr.rel (0) target = $region17
    $region16: #{binary_encoding_forward.1} parent=1 // pred_region
      %s34 = ssub.s32 4096, 4096
      %35 = vsyncadd [#allocation5], %s34
      %s36 = sshll.u32 [#allocation4], 4
      %s37 = int_to_ptr.vmem [resolvable:$true] %s36
      %42 = dma.hbm_to_vmem [thread:$0]  %s3, 4096, %s37, [#allocation5], 256, 256, 16
    $region17: #{binary_encoding_forward.1} parent=1 // pred_fallthru
      _
    // Predicated region
    $region18: #{binary_encoding_forward.1} parent=1 // pred_check
      _
    $region19: #{binary_encoding_forward.1} parent=1 // pred_check_branch
      %44 = sbr.rel (0) target = $region21
    $region20: #{binary_encoding_forward.1} parent=1 // pred_region
      _
    $region21: #{binary_encoding_forward.1} parent=1 // pred_fallthru
      _
    // Predicated region
    $region22: #{binary_encoding_forward.1} parent=1 // pred_check
      _
    $region23: #{binary_encoding_forward.1} parent=1 // pred_check_branch
      %46 = sbr.rel (0) target = $region25
    $region24: #{binary_encoding_forward.1} parent=1 // pred_region
      %s48 = ssub.s32 4096, 4096
      %49 = vsyncadd [#allocation5], %s48
      %s50 = sshll.u32 [#allocation6], 4
      %s51 = int_to_ptr.vmem [resolvable:$true] %s50
      %56 = dma.hbm_to_vmem [thread:$0]  %s5, 4096, %s51, [#allocation5], 128, 128, 8
    $region25: #{binary_encoding_forward.1} parent=1 // pred_fallthru
      _
    // Predicated region
    $region26: #{binary_encoding_forward.1} parent=1 // pred_check
      _
    $region27: #{binary_encoding_forward.1} parent=1 // pred_check_branch
      %58 = sbr.rel (0) target = $region29
    $region28: #{binary_encoding_forward.1} parent=1 // pred_region
      %s60 = ssub.s32 8192, 8192
      %61 = vsyncadd [#allocation8], %s60
      %s62 = sshll.u32 [#allocation7], 4
      %s63 = int_to_ptr.vmem [resolvable:$true] %s62
      %68 = dma.hbm_to_vmem [thread:$0]  %s6, 8192, %s63, [#allocation8], 256, 256, 16
    $region29: #{binary_encoding_forward.1} parent=1 // pred_fallthru
      _
    // Predicated region
    $region30: #{binary_encoding_forward.1} parent=1 // pred_check
      _
    $region31: #{binary_encoding_forward.1} parent=1 // pred_check_branch
      %70 = sbr.rel (0) target = $region33
    $region32: #{binary_encoding_forward.1} parent=1 // pred_region
      %71 = dma.done [#allocation3], 2048
    $region33: #{binary_encoding_forward.1} parent=1 // pred_fallthru
      _
    // Predicated region
    $region34: #{binary_encoding_forward.1} parent=1 // pred_check
      _
    $region35: #{binary_encoding_forward.1} parent=1 // pred_check_branch
      %73 = sbr.rel (0) target = $region37
    $region36: #{binary_encoding_forward.1} parent=1 // pred_region
      %74 = dma.done [#allocation5], 4096
    $region37: #{binary_encoding_forward.1} parent=1 // pred_fallthru
      _
    // Predicated region
    $region38: #{binary_encoding_forward.1} parent=1 // pred_check
      _
    $region39: #{binary_encoding_forward.1} parent=1 // pred_check_branch
      %76 = sbr.rel (0) target = $region41
    $region40: #{binary_encoding_forward.1} parent=1 // pred_region
      %77 = dma.done [#allocation5], 4096
    $region41: #{binary_encoding_forward.1} parent=1 // pred_fallthru
      _
    // Predicated region
    $region42: #{binary_encoding_forward.1} parent=1 // pred_check
      _
    $region43: #{binary_encoding_forward.1} parent=1 // pred_check_branch
      %79 = sbr.rel (0) target = $region45
    $region44: #{binary_encoding_forward.1} parent=1 // pred_region
      %80 = dma.done [#allocation8], 8192
    $region45: #{binary_encoding_forward.1} parent=1 // pred_fallthru
      _
    %v81 = vld [vmem:[%s0] sm:$0x3]
    %v82 = vld [vmem:[#allocation2] sm:$0xff]
    %v83 = vld [vmem:[#allocation2 + $0x8] sm:$0xff]
    %v84 = vld [vmem:[#allocation2 + $0x10] sm:$0xff]
    %v85 = vld [vmem:[#allocation2 + $0x18] sm:$0xff]
    %v86 = vld [vmem:[#allocation2 + $0x20] sm:$0xff]
    %v87 = vld [vmem:[#allocation2 + $0x28] sm:$0xff]
    %v88 = vld [vmem:[#allocation2 + $0x30] sm:$0xff]
    %v89 = vld [vmem:[#allocation2 + $0x38] sm:$0xff]
    %v90 = vld [vmem:[#allocation2 + $0x40] sm:$0xff]
    %v91 = vld [vmem:[#allocation2 + $0x48] sm:$0xff]
    %v92 = vld [vmem:[#allocation2 + $0x50] sm:$0xff]
    %v93 = vld [vmem:[#allocation2 + $0x58] sm:$0xff]
    %v94 = vld [vmem:[#allocation2 + $0x60] sm:$0xff]
    %v95 = vld [vmem:[#allocation2 + $0x68] sm:$0xff]
    %v96 = vld [vmem:[#allocation2 + $0x70] sm:$0xff]
    %v97 = vld [vmem:[#allocation2 + $0x78] sm:$0xff]
    %v98 = vld [vmem:[%s2] sm:$0x1]
    %v100 = vlaneseq
    %v101 = vshrl.u32 %v100, 7
    %v102 = vsub.s32 0, %v101
    %v103 = vrot.slane %v98, %v102
    %105 = vmatprep.subr.mxu0 0.0
    %106 = vmatpush1.msra.mxu0 %v82
    %107 = vmatprep.subr.mxu0 0.0
    %108 = vmatpush1.msra.mxu0 %v83
    %109 = vmatprep.subr.mxu0 0.0
    %110 = vmatpush1.msra.mxu0 %v84
    %111 = vmatprep.subr.mxu0 0.0
    %112 = vmatpush1.msra.mxu0 %v85
    %113 = vmatprep.subr.mxu0 0.0
    %114 = vmatpush1.msra.mxu0 %v86
    %115 = vmatprep.subr.mxu0 0.0
    %116 = vmatpush1.msra.mxu0 %v87
    %117 = vmatprep.subr.mxu0 0.0
    %118 = vmatpush1.msra.mxu0 %v88
    %119 = vmatprep.subr.mxu0 0.0
    %120 = vmatpush1.msra.mxu0 %v89
    %121 = vmatprep.subr.mxu0 0.0
    %122 = vmatpush1.msra.mxu0 %v90
    %123 = vmatprep.subr.mxu0 0.0
    %124 = vmatpush1.msra.mxu0 %v91
    %125 = vmatprep.subr.mxu0 0.0
    %126 = vmatpush1.msra.mxu0 %v92
    %127 = vmatprep.subr.mxu0 0.0
    %128 = vmatpush1.msra.mxu0 %v93
    %129 = vmatprep.subr.mxu0 0.0
    %130 = vmatpush1.msra.mxu0 %v94
    %131 = vmatprep.subr.mxu0 0.0
    %132 = vmatpush1.msra.mxu0 %v95
    %133 = vmatprep.subr.mxu0 0.0
    %134 = vmatpush1.msra.mxu0 %v96
    %135 = vmatprep.subr.mxu0 0.0
    %136 = vmatpush1.msra.mxu0 %v97
    %137 = vmatprep.subr.mxu0 0.0
    %138 = vmatpush1.msra.mxu0 0.0
    %139 = vmatprep.subr.mxu0 0.0
    %140 = vmatpush1.msra.mxu0 0.0
    %141 = vmatprep.subr.mxu0 0.0
    %142 = vmatpush1.msra.mxu0 0.0
    %143 = vmatprep.subr.mxu0 0.0
    %144 = vmatpush1.msra.mxu0 0.0
    %145 = vmatprep.subr.mxu0 0.0
    %146 = vmatpush1.msra.mxu0 0.0
    %147 = vmatprep.subr.mxu0 0.0
    %148 = vmatpush1.msra.mxu0 0.0
    %149 = vmatprep.subr.mxu0 0.0
    %150 = vmatpush1.msra.mxu0 0.0
    %151 = vmatprep.subr.mxu0 0.0
    %152 = vmatpush1.msra.mxu0 0.0
    %153 = vmatprep.subr.mxu0 0.0
    %154 = vmatpush1.msra.mxu0 0.0
    %155 = vmatprep.subr.mxu0 0.0
    %156 = vmatpush1.msra.mxu0 0.0
    %157 = vmatprep.subr.mxu0 0.0
    %158 = vmatpush1.msra.mxu0 0.0
    %159 = vmatprep.subr.mxu0 0.0
    %160 = vmatpush1.msra.mxu0 0.0
    %161 = vmatprep.subr.mxu0 0.0
    %162 = vmatpush1.msra.mxu0 0.0
    %163 = vmatprep.subr.mxu0 0.0
    %164 = vmatpush1.msra.mxu0 0.0
    %165 = vmatprep.subr.mxu0 0.0
    %166 = vmatpush1.msra.mxu0 0.0
    %167 = vmatprep.subr.mxu0 0.0
    %168 = vmatpush1.msra.mxu0 0.0
    %169 = vmatprep.mubr.f32.mxu0 0.0
    %170 = vmatmul.mubr.f32.gmra.mrb[0].mxu0 %v81
    %v171 = vpop.f32.mrb[0].mxu0
    %v172 = vadd.f32 %v103, %v171
    %v173 = vpop.f32.mrb[0].mxu0
    %174 = vdwg.mxu0
    %v175 = vtanh.pop %v172
    %v176 = vld [vmem:[#allocation4] sm:$0xff]
    %v177 = vld [vmem:[#allocation4 + $0x8] sm:$0xff]
    %v178 = vld [vmem:[#allocation4 + $0x10] sm:$0xff]
    %v179 = vld [vmem:[#allocation4 + $0x18] sm:$0xff]
    %v180 = vld [vmem:[#allocation4 + $0x20] sm:$0xff]
    %v181 = vld [vmem:[#allocation4 + $0x28] sm:$0xff]
    %v182 = vld [vmem:[#allocation4 + $0x30] sm:$0xff]
    %v183 = vld [vmem:[#allocation4 + $0x38] sm:$0xff]
    %v184 = vld [vmem:[#allocation4 + $0x40] sm:$0xff]
    %v185 = vld [vmem:[#allocation4 + $0x48] sm:$0xff]
    %v186 = vld [vmem:[#allocation4 + $0x50] sm:$0xff]
    %v187 = vld [vmem:[#allocation4 + $0x58] sm:$0xff]
    %v188 = vld [vmem:[#allocation4 + $0x60] sm:$0xff]
    %v189 = vld [vmem:[#allocation4 + $0x68] sm:$0xff]
    %v190 = vld [vmem:[#allocation4 + $0x70] sm:$0xff]
    %v191 = vld [vmem:[#allocation4 + $0x78] sm:$0xff]
    %v192 = vld [vmem:[#allocation4 + $0x80] sm:$0xff]
    %v193 = vld [vmem:[#allocation4 + $0x88] sm:$0xff]
    %v194 = vld [vmem:[#allocation4 + $0x90] sm:$0xff]
    %v195 = vld [vmem:[#allocation4 + $0x98] sm:$0xff]
    %v196 = vld [vmem:[#allocation4 + $0xa0] sm:$0xff]
    %v197 = vld [vmem:[#allocation4 + $0xa8] sm:$0xff]
    %v198 = vld [vmem:[#allocation4 + $0xb0] sm:$0xff]
    %v199 = vld [vmem:[#allocation4 + $0xb8] sm:$0xff]
    %v200 = vld [vmem:[#allocation4 + $0xc0] sm:$0xff]
    %v201 = vld [vmem:[#allocation4 + $0xc8] sm:$0xff]
    %v202 = vld [vmem:[#allocation4 + $0xd0] sm:$0xff]
    %v203 = vld [vmem:[#allocation4 + $0xd8] sm:$0xff]
    %v204 = vld [vmem:[#allocation4 + $0xe0] sm:$0xff]
    %v205 = vld [vmem:[#allocation4 + $0xe8] sm:$0xff]
    %v206 = vld [vmem:[#allocation4 + $0xf0] sm:$0xff]
    %v207 = vld [vmem:[#allocation4 + $0xf8] sm:$0xff]
    %v208 = vld [vmem:[%s4] sm:$0x3]
    %v210 = vlaneseq
    %v211 = vshrl.u32 %v210, 7
    %v212 = vsub.s32 0, %v211
    %v213 = vrot.slane %v208, %v212
    %v214 = vlaneseq
    %v215 = vshrl.u32 %v214, 7
    %v216 = vsub.s32 1, %v215
    %v217 = vrot.slane %v208, %v216
    %220 = vmatprep.subr.mxu0 %v177
    %221 = vmatpush1.msra.mxu0 %v176
    %222 = vmatprep.subr.mxu0 %v179
    %223 = vmatpush1.msra.mxu0 %v178
    %224 = vmatprep.subr.mxu0 %v181
    %225 = vmatpush1.msra.mxu0 %v180
    %226 = vmatprep.subr.mxu0 %v183
    %227 = vmatpush1.msra.mxu0 %v182
    %228 = vmatprep.subr.mxu0 %v185
    %229 = vmatpush1.msra.mxu0 %v184
    %230 = vmatprep.subr.mxu0 %v187
    %231 = vmatpush1.msra.mxu0 %v186
    %232 = vmatprep.subr.mxu0 %v189
    %233 = vmatpush1.msra.mxu0 %v188
    %234 = vmatprep.subr.mxu0 %v191
    %235 = vmatpush1.msra.mxu0 %v190
    %236 = vmatprep.subr.mxu0 %v193
    %237 = vmatpush1.msra.mxu0 %v192
    %238 = vmatprep.subr.mxu0 %v195
    %239 = vmatpush1.msra.mxu0 %v194
    %240 = vmatprep.subr.mxu0 %v197
    %241 = vmatpush1.msra.mxu0 %v196
    %242 = vmatprep.subr.mxu0 %v199
    %243 = vmatpush1.msra.mxu0 %v198
    %244 = vmatprep.subr.mxu0 %v201
    %245 = vmatpush1.msra.mxu0 %v200
    %246 = vmatprep.subr.mxu0 %v203
    %247 = vmatpush1.msra.mxu0 %v202
    %248 = vmatprep.subr.mxu0 %v205
    %249 = vmatpush1.msra.mxu0 %v204
    %250 = vmatprep.subr.mxu0 %v207
    %251 = vmatpush1.msra.mxu0 %v206
    %252 = vmatprep.subr.mxu0 0.0
    %253 = vmatpush1.msra.mxu0 0.0
    %254 = vmatprep.subr.mxu0 0.0
    %255 = vmatpush1.msra.mxu0 0.0
    %256 = vmatprep.subr.mxu0 0.0
    %257 = vmatpush1.msra.mxu0 0.0
    %258 = vmatprep.subr.mxu0 0.0
    %259 = vmatpush1.msra.mxu0 0.0
    %260 = vmatprep.subr.mxu0 0.0
    %261 = vmatpush1.msra.mxu0 0.0
    %262 = vmatprep.subr.mxu0 0.0
    %263 = vmatpush1.msra.mxu0 0.0
    %264 = vmatprep.subr.mxu0 0.0
    %265 = vmatpush1.msra.mxu0 0.0
    %266 = vmatprep.subr.mxu0 0.0
    %267 = vmatpush1.msra.mxu0 0.0
    %268 = vmatprep.subr.mxu0 0.0
    %269 = vmatpush1.msra.mxu0 0.0
    %270 = vmatprep.subr.mxu0 0.0
    %271 = vmatpush1.msra.mxu0 0.0
    %272 = vmatprep.subr.mxu0 0.0
    %273 = vmatpush1.msra.mxu0 0.0
    %274 = vmatprep.subr.mxu0 0.0
    %275 = vmatpush1.msra.mxu0 0.0
    %276 = vmatprep.subr.mxu0 0.0
    %277 = vmatpush1.msra.mxu0 0.0
    %278 = vmatprep.subr.mxu0 0.0
    %279 = vmatpush1.msra.mxu0 0.0
    %280 = vmatprep.subr.mxu0 0.0
    %281 = vmatpush1.msra.mxu0 0.0
    %282 = vmatprep.subr.mxu0 0.0
    %283 = vmatpush1.msra.mxu0 0.0
    %284 = vmatprep.mubr.f32.mxu0 0.0
    %285 = vmatmul.mubr.f32.gmra.mrb[0].mxu0 %v175
    %v286 = vpop.f32.mrb[0].mxu0
    %v287 = vadd.f32 %v213, %v286
    %v288 = vpop.f32.mrb[0].mxu0
    %v289 = vadd.f32 %v217, %v288
    %290 = vdwg.mxu0
    %vm291 = vcmask 123904
    %v292 = vsel %vm291, %v287, -inf
    %293 = vmax.xlane.f32.xlu0 %v292
    %v294 = vpop.xlane.xlu0 %293
    %vm295 = vcmp.ge.f32.partialorder %v287, %v294
    %v296 = vsel %vm295, 1, 0
    %v297 = vcvt.s32.f32 %v296
    %vm298 = vcmask 255104
    %v299 = vsel %vm298, %v287, -inf
    %300 = vmax.xlane.f32.xlu0 %v299
    %v301 = vpop.xlane.xlu0 %300
    %vm302 = vcmp.ge.f32.partialorder %v287, %v301
    %v303 = vsel %vm302, 1, 0
    %v304 = vcvt.s32.f32 %v303
    %vm305 = vcmask 386304
    %v306 = vsel %vm305, %v287, -inf
    %307 = vmax.xlane.f32.xlu0 %v306
    %v308 = vpop.xlane.xlu0 %307
    %vm309 = vcmp.ge.f32.partialorder %v287, %v308
    %v310 = vsel %vm309, 1, 0
    %v311 = vcvt.s32.f32 %v310
    %vm312 = vcmask 517504
    %v313 = vsel %vm312, %v287, -inf
    %314 = vmax.xlane.f32.xlu0 %v313
    %v315 = vpop.xlane.xlu0 %314
    %vm316 = vcmp.ge.f32.partialorder %v287, %v315
    %v317 = vsel %vm316, 1, 0
    %v318 = vcvt.s32.f32 %v317
    %vm319 = vcmask 648704
    %v320 = vsel %vm319, %v287, -inf
    %321 = vmax.xlane.f32.xlu0 %v320
    %v322 = vpop.xlane.xlu0 %321
    %vm323 = vcmp.ge.f32.partialorder %v287, %v322
    %v324 = vsel %vm323, 1, 0
    %v325 = vcvt.s32.f32 %v324
    %vm326 = vcmask 779904
    %v327 = vsel %vm326, %v287, -inf
    %328 = vmax.xlane.f32.xlu0 %v327
    %v329 = vpop.xlane.xlu0 %328
    %vm330 = vcmp.ge.f32.partialorder %v287, %v329
    %v331 = vsel %vm330, 1, 0
    %v332 = vcvt.s32.f32 %v331
    %vm333 = vcmask 911104
    %v334 = vsel %vm333, %v287, -inf
    %335 = vmax.xlane.f32.xlu0 %v334
    %v336 = vpop.xlane.xlu0 %335
    %vm337 = vcmp.ge.f32.partialorder %v287, %v336
    %v338 = vsel %vm337, 1, 0
    %v339 = vcvt.s32.f32 %v338
    %vm340 = vcmask 1042304
    %v341 = vsel %vm340, %v287, -inf
    %342 = vmax.xlane.f32.xlu0 %v341
    %v343 = vpop.xlane.xlu0 %342
    %vm344 = vcmp.ge.f32.partialorder %v287, %v343
    %v345 = vsel %vm344, 1, 0
    %v346 = vcvt.s32.f32 %v345
    %v347 = vsel %vm291, %v289, -inf
    %348 = vmax.xlane.f32.xlu0 %v347
    %v349 = vpop.xlane.xlu0 %348
    %vm350 = vcmp.ge.f32.partialorder %v289, %v349
    %v351 = vsel %vm350, 1, 0
    %v352 = vcvt.s32.f32 %v351
    %v353 = vsel %vm298, %v289, -inf
    %354 = vmax.xlane.f32.xlu0 %v353
    %v355 = vpop.xlane.xlu0 %354
    %vm356 = vcmp.ge.f32.partialorder %v289, %v355
    %v357 = vsel %vm356, 1, 0
    %v358 = vcvt.s32.f32 %v357
    %v359 = vsel %vm305, %v289, -inf
    %360 = vmax.xlane.f32.xlu0 %v359
    %v361 = vpop.xlane.xlu0 %360
    %vm362 = vcmp.ge.f32.partialorder %v289, %v361
    %v363 = vsel %vm362, 1, 0
    %v364 = vcvt.s32.f32 %v363
    %v365 = vsel %vm312, %v289, -inf
    %366 = vmax.xlane.f32.xlu0 %v365
    %v367 = vpop.xlane.xlu0 %366
    %vm368 = vcmp.ge.f32.partialorder %v289, %v367
    %v369 = vsel %vm368, 1, 0
    %v370 = vcvt.s32.f32 %v369
    %v371 = vsel %vm319, %v289, -inf
    %372 = vmax.xlane.f32.xlu0 %v371
    %v373 = vpop.xlane.xlu0 %372
    %vm374 = vcmp.ge.f32.partialorder %v289, %v373
    %v375 = vsel %vm374, 1, 0
    %v376 = vcvt.s32.f32 %v375
    %v377 = vsel %vm326, %v289, -inf
    %378 = vmax.xlane.f32.xlu0 %v377
    %v379 = vpop.xlane.xlu0 %378
    %vm380 = vcmp.ge.f32.partialorder %v289, %v379
    %v381 = vsel %vm380, 1, 0
    %v382 = vcvt.s32.f32 %v381
    %v383 = vsel %vm333, %v289, -inf
    %384 = vmax.xlane.f32.xlu0 %v383
    %v385 = vpop.xlane.xlu0 %384
    %vm386 = vcmp.ge.f32.partialorder %v289, %v385
    %v387 = vsel %vm386, 1, 0
    %v388 = vcvt.s32.f32 %v387
    %v389 = vsel %vm340, %v289, -inf
    %390 = vmax.xlane.f32.xlu0 %v389
    %v391 = vpop.xlane.xlu0 %390
    %vm392 = vcmp.ge.f32.partialorder %v289, %v391
    %v393 = vsel %vm392, 1, 0
    %v394 = vcvt.s32.f32 %v393
    %vm395 = vcmask 130048
    %v396 = vsel %vm395, %v297, %v304
    %vm397 = vcmask 261120
    %v398 = vsel %vm397, %v396, %v311
    %vm399 = vcmask 392192
    %v400 = vsel %vm399, %v398, %v318
    %vm401 = vcmask 523264
    %v402 = vsel %vm401, %v400, %v325
    %vm403 = vcmask 654336
    %v404 = vsel %vm403, %v402, %v332
    %vm405 = vcmask 785408
    %v406 = vsel %vm405, %v404, %v339
    %vm407 = vcmask 916480
    %v408 = vsel %vm407, %v406, %v346
    %v409 = vsel %vm395, %v352, %v358
    %v410 = vsel %vm397, %v409, %v364
    %v411 = vsel %vm399, %v410, %v370
    %v412 = vsel %vm401, %v411, %v376
    %v413 = vsel %vm403, %v412, %v382
    %v414 = vsel %vm405, %v413, %v388
    %v415 = vsel %vm407, %v414, %v394
    %v416 = vld [vmem:[#allocation7] sm:$0xff]
    %v417 = vld [vmem:[#allocation7 + $0x8] sm:$0xff]
    %v418 = vld [vmem:[#allocation7 + $0x10] sm:$0xff]
    %v419 = vld [vmem:[#allocation7 + $0x18] sm:$0xff]
    %v420 = vld [vmem:[#allocation7 + $0x20] sm:$0xff]
    %v421 = vld [vmem:[#allocation7 + $0x28] sm:$0xff]
    %v422 = vld [vmem:[#allocation7 + $0x30] sm:$0xff]
    %v423 = vld [vmem:[#allocation7 + $0x38] sm:$0xff]
    %v424 = vld [vmem:[#allocation7 + $0x40] sm:$0xff]
    %v425 = vld [vmem:[#allocation7 + $0x48] sm:$0xff]
    %v426 = vld [vmem:[#allocation7 + $0x50] sm:$0xff]
    %v427 = vld [vmem:[#allocation7 + $0x58] sm:$0xff]
    %v428 = vld [vmem:[#allocation7 + $0x60] sm:$0xff]
    %v429 = vld [vmem:[#allocation7 + $0x68] sm:$0xff]
    %v430 = vld [vmem:[#allocation7 + $0x70] sm:$0xff]
    %v431 = vld [vmem:[#allocation7 + $0x78] sm:$0xff]
    %v432 = vld [vmem:[#allocation7 + $0x80] sm:$0xff]
    %v433 = vld [vmem:[#allocation7 + $0x88] sm:$0xff]
    %v434 = vld [vmem:[#allocation7 + $0x90] sm:$0xff]
    %v435 = vld [vmem:[#allocation7 + $0x98] sm:$0xff]
    %v436 = vld [vmem:[#allocation7 + $0xa0] sm:$0xff]
    %v437 = vld [vmem:[#allocation7 + $0xa8] sm:$0xff]
    %v438 = vld [vmem:[#allocation7 + $0xb0] sm:$0xff]
    %v439 = vld [vmem:[#allocation7 + $0xb8] sm:$0xff]
    %v440 = vld [vmem:[#allocation7 + $0xc0] sm:$0xff]
    %v441 = vld [vmem:[#allocation7 + $0xc8] sm:$0xff]
    %v442 = vld [vmem:[#allocation7 + $0xd0] sm:$0xff]
    %v443 = vld [vmem:[#allocation7 + $0xd8] sm:$0xff]
    %v444 = vld [vmem:[#allocation7 + $0xe0] sm:$0xff]
    %v445 = vld [vmem:[#allocation7 + $0xe8] sm:$0xff]
    %v446 = vld [vmem:[#allocation7 + $0xf0] sm:$0xff]
    %v447 = vld [vmem:[#allocation7 + $0xf8] sm:$0xff]
    %v448 = vld [vmem:[#allocation7 + $0x100] sm:$0xff]
    %v449 = vld [vmem:[#allocation7 + $0x108] sm:$0xff]
    %v450 = vld [vmem:[#allocation7 + $0x110] sm:$0xff]
    %v451 = vld [vmem:[#allocation7 + $0x118] sm:$0xff]
    %v452 = vld [vmem:[#allocation7 + $0x120] sm:$0xff]
    %v453 = vld [vmem:[#allocation7 + $0x128] sm:$0xff]
    %v454 = vld [vmem:[#allocation7 + $0x130] sm:$0xff]
    %v455 = vld [vmem:[#allocation7 + $0x138] sm:$0xff]
    %v456 = vld [vmem:[#allocation7 + $0x140] sm:$0xff]
    %v457 = vld [vmem:[#allocation7 + $0x148] sm:$0xff]
    %v458 = vld [vmem:[#allocation7 + $0x150] sm:$0xff]
    %v459 = vld [vmem:[#allocation7 + $0x158] sm:$0xff]
    %v460 = vld [vmem:[#allocation7 + $0x160] sm:$0xff]
    %v461 = vld [vmem:[#allocation7 + $0x168] sm:$0xff]
    %v462 = vld [vmem:[#allocation7 + $0x170] sm:$0xff]
    %v463 = vld [vmem:[#allocation7 + $0x178] sm:$0xff]
    %v464 = vld [vmem:[#allocation7 + $0x180] sm:$0xff]
    %v465 = vld [vmem:[#allocation7 + $0x188] sm:$0xff]
    %v466 = vld [vmem:[#allocation7 + $0x190] sm:$0xff]
    %v467 = vld [vmem:[#allocation7 + $0x198] sm:$0xff]
    %v468 = vld [vmem:[#allocation7 + $0x1a0] sm:$0xff]
    %v469 = vld [vmem:[#allocation7 + $0x1a8] sm:$0xff]
    %v470 = vld [vmem:[#allocation7 + $0x1b0] sm:$0xff]
    %v471 = vld [vmem:[#allocation7 + $0x1b8] sm:$0xff]
    %v472 = vld [vmem:[#allocation7 + $0x1c0] sm:$0xff]
    %v473 = vld [vmem:[#allocation7 + $0x1c8] sm:$0xff]
    %v474 = vld [vmem:[#allocation7 + $0x1d0] sm:$0xff]
    %v475 = vld [vmem:[#allocation7 + $0x1d8] sm:$0xff]
    %v476 = vld [vmem:[#allocation7 + $0x1e0] sm:$0xff]
    %v477 = vld [vmem:[#allocation7 + $0x1e8] sm:$0xff]
    %v478 = vld [vmem:[#allocation7 + $0x1f0] sm:$0xff]
    %v479 = vld [vmem:[#allocation7 + $0x1f8] sm:$0xff]
    %480 = vmatprep.subr.mxu0 %v417
    %481 = vmatpush1.msra.mxu0 %v416
    %482 = vmatprep.subr.mxu0 %v419
    %483 = vmatpush1.msra.mxu0 %v418
    %484 = vmatprep.subr.mxu0 %v421
    %485 = vmatpush1.msra.mxu0 %v420
    %486 = vmatprep.subr.mxu0 %v423
    %487 = vmatpush1.msra.mxu0 %v422
    %488 = vmatprep.subr.mxu0 %v425
    %489 = vmatpush1.msra.mxu0 %v424
    %490 = vmatprep.subr.mxu0 %v427
    %491 = vmatpush1.msra.mxu0 %v426
    %492 = vmatprep.subr.mxu0 %v429
    %493 = vmatpush1.msra.mxu0 %v428
    %494 = vmatprep.subr.mxu0 %v431
    %495 = vmatpush1.msra.mxu0 %v430
    %496 = vmatprep.subr.mxu0 %v433
    %497 = vmatpush1.msra.mxu0 %v432
    %498 = vmatprep.subr.mxu0 %v435
    %499 = vmatpush1.msra.mxu0 %v434
    %500 = vmatprep.subr.mxu0 %v437
    %501 = vmatpush1.msra.mxu0 %v436
    %502 = vmatprep.subr.mxu0 %v439
    %503 = vmatpush1.msra.mxu0 %v438
    %504 = vmatprep.subr.mxu0 %v441
    %505 = vmatpush1.msra.mxu0 %v440
    %506 = vmatprep.subr.mxu0 %v443
    %507 = vmatpush1.msra.mxu0 %v442
    %508 = vmatprep.subr.mxu0 %v445
    %509 = vmatpush1.msra.mxu0 %v444
    %510 = vmatprep.subr.mxu0 %v447
    %511 = vmatpush1.msra.mxu0 %v446
    %512 = vmatprep.subr.mxu0 %v449
    %513 = vmatpush1.msra.mxu0 %v448
    %514 = vmatprep.subr.mxu0 %v451
    %515 = vmatpush1.msra.mxu0 %v450
    %516 = vmatprep.subr.mxu0 %v453
    %517 = vmatpush1.msra.mxu0 %v452
    %518 = vmatprep.subr.mxu0 %v455
    %519 = vmatpush1.msra.mxu0 %v454
    %520 = vmatprep.subr.mxu0 %v457
    %521 = vmatpush1.msra.mxu0 %v456
    %522 = vmatprep.subr.mxu0 %v459
    %523 = vmatpush1.msra.mxu0 %v458
    %524 = vmatprep.subr.mxu0 %v461
    %525 = vmatpush1.msra.mxu0 %v460
    %526 = vmatprep.subr.mxu0 %v463
    %527 = vmatpush1.msra.mxu0 %v462
    %528 = vmatprep.subr.mxu0 %v465
    %529 = vmatpush1.msra.mxu0 %v464
    %530 = vmatprep.subr.mxu0 %v467
    %531 = vmatpush1.msra.mxu0 %v466
    %532 = vmatprep.subr.mxu0 %v469
    %533 = vmatpush1.msra.mxu0 %v468
    %534 = vmatprep.subr.mxu0 %v471
    %535 = vmatpush1.msra.mxu0 %v470
    %536 = vmatprep.subr.mxu0 %v473
    %537 = vmatpush1.msra.mxu0 %v472
    %538 = vmatprep.subr.mxu0 %v475
    %539 = vmatpush1.msra.mxu0 %v474
    %540 = vmatprep.subr.mxu0 %v477
    %541 = vmatpush1.msra.mxu0 %v476
    %542 = vmatprep.subr.mxu0 %v479
    %543 = vmatpush1.msra.mxu0 %v478
    %544 = vmatprep.mubr.f32.mxu0 %v415
    %545 = vmatmul.mubr.f32.gmra.mrb[0].mxu0 %v408
    %v546 = vpop.f32.mrb[0].mxu0
    %v547 = vadd.f32 0.0, %v546
    %v548 = vpop.f32.mrb[0].mxu0
    %v549 = vadd.f32 0.0, %v548
    %550 = vdwg.mxu0
    %vm551 = vcmp.lt.f32.partialorder %v547, 0.5
    %vm552 = vcmp.lt.f32.partialorder %v549, 0.5
    %v553 = vsel %vm551, %v408, 0.0
    %v554 = vsel %vm552, %v415, 0.0
    %v555 = vld [vmem:[#allocation6] sm:$0xff]
    %v556 = vld [vmem:[#allocation6 + $0x8] sm:$0xff]
    %v557 = vld [vmem:[#allocation6 + $0x10] sm:$0xff]
    %v558 = vld [vmem:[#allocation6 + $0x18] sm:$0xff]
    %v559 = vld [vmem:[#allocation6 + $0x20] sm:$0xff]
    %v560 = vld [vmem:[#allocation6 + $0x28] sm:$0xff]
    %v561 = vld [vmem:[#allocation6 + $0x30] sm:$0xff]
    %v562 = vld [vmem:[#allocation6 + $0x38] sm:$0xff]
    %v563 = vld [vmem:[#allocation6 + $0x40] sm:$0xff]
    %v564 = vld [vmem:[#allocation6 + $0x48] sm:$0xff]
    %v565 = vld [vmem:[#allocation6 + $0x50] sm:$0xff]
    %v566 = vld [vmem:[#allocation6 + $0x58] sm:$0xff]
    %v567 = vld [vmem:[#allocation6 + $0x60] sm:$0xff]
    %v568 = vld [vmem:[#allocation6 + $0x68] sm:$0xff]
    %v569 = vld [vmem:[#allocation6 + $0x70] sm:$0xff]
    %v570 = vld [vmem:[#allocation6 + $0x78] sm:$0xff]
    %v571 = vld [vmem:[#allocation6 + $0x80] sm:$0xff]
    %v572 = vld [vmem:[#allocation6 + $0x88] sm:$0xff]
    %v573 = vld [vmem:[#allocation6 + $0x90] sm:$0xff]
    %v574 = vld [vmem:[#allocation6 + $0x98] sm:$0xff]
    %v575 = vld [vmem:[#allocation6 + $0xa0] sm:$0xff]
    %v576 = vld [vmem:[#allocation6 + $0xa8] sm:$0xff]
    %v577 = vld [vmem:[#allocation6 + $0xb0] sm:$0xff]
    %v578 = vld [vmem:[#allocation6 + $0xb8] sm:$0xff]
    %v579 = vld [vmem:[#allocation6 + $0xc0] sm:$0xff]
    %v580 = vld [vmem:[#allocation6 + $0xc8] sm:$0xff]
    %v581 = vld [vmem:[#allocation6 + $0xd0] sm:$0xff]
    %v582 = vld [vmem:[#allocation6 + $0xd8] sm:$0xff]
    %v583 = vld [vmem:[#allocation6 + $0xe0] sm:$0xff]
    %v584 = vld [vmem:[#allocation6 + $0xe8] sm:$0xff]
    %v585 = vld [vmem:[#allocation6 + $0xf0] sm:$0xff]
    %v586 = vld [vmem:[#allocation6 + $0xf8] sm:$0xff]
    %587 = vmatprep.subr.mxu0 0.0
    %588 = vmatpush1.msra.mxu0 %v555
    %589 = vmatprep.subr.mxu0 0.0
    %590 = vmatpush1.msra.mxu0 %v556
    %591 = vmatprep.subr.mxu0 0.0
    %592 = vmatpush1.msra.mxu0 %v557
    %593 = vmatprep.subr.mxu0 0.0
    %594 = vmatpush1.msra.mxu0 %v558
    %595 = vmatprep.subr.mxu0 0.0
    %596 = vmatpush1.msra.mxu0 %v559
    %597 = vmatprep.subr.mxu0 0.0
    %598 = vmatpush1.msra.mxu0 %v560
    %599 = vmatprep.subr.mxu0 0.0
    %600 = vmatpush1.msra.mxu0 %v561
    %601 = vmatprep.subr.mxu0 0.0
    %602 = vmatpush1.msra.mxu0 %v562
    %603 = vmatprep.subr.mxu0 0.0
    %604 = vmatpush1.msra.mxu0 %v563
    %605 = vmatprep.subr.mxu0 0.0
    %606 = vmatpush1.msra.mxu0 %v564
    %607 = vmatprep.subr.mxu0 0.0
    %608 = vmatpush1.msra.mxu0 %v565
    %609 = vmatprep.subr.mxu0 0.0
    %610 = vmatpush1.msra.mxu0 %v566
    %611 = vmatprep.subr.mxu0 0.0
    %612 = vmatpush1.msra.mxu0 %v567
    %613 = vmatprep.subr.mxu0 0.0
    %614 = vmatpush1.msra.mxu0 %v568
    %615 = vmatprep.subr.mxu0 0.0
    %616 = vmatpush1.msra.mxu0 %v569
    %617 = vmatprep.subr.mxu0 0.0
    %618 = vmatpush1.msra.mxu0 %v570
    %619 = vmatprep.subr.mxu0 0.0
    %620 = vmatpush1.msra.mxu0 %v571
    %621 = vmatprep.subr.mxu0 0.0
    %622 = vmatpush1.msra.mxu0 %v572
    %623 = vmatprep.subr.mxu0 0.0
    %624 = vmatpush1.msra.mxu0 %v573
    %625 = vmatprep.subr.mxu0 0.0
    %626 = vmatpush1.msra.mxu0 %v574
    %627 = vmatprep.subr.mxu0 0.0
    %628 = vmatpush1.msra.mxu0 %v575
    %629 = vmatprep.subr.mxu0 0.0
    %630 = vmatpush1.msra.mxu0 %v576
    %631 = vmatprep.subr.mxu0 0.0
    %632 = vmatpush1.msra.mxu0 %v577
    %633 = vmatprep.subr.mxu0 0.0
    %634 = vmatpush1.msra.mxu0 %v578
    %635 = vmatprep.subr.mxu0 0.0
    %636 = vmatpush1.msra.mxu0 %v579
    %637 = vmatprep.subr.mxu0 0.0
    %638 = vmatpush1.msra.mxu0 %v580
    %639 = vmatprep.subr.mxu0 0.0
    %640 = vmatpush1.msra.mxu0 %v581
    %641 = vmatprep.subr.mxu0 0.0
    %642 = vmatpush1.msra.mxu0 %v582
    %643 = vmatprep.subr.mxu0 0.0
    %644 = vmatpush1.msra.mxu0 %v583
    %645 = vmatprep.subr.mxu0 0.0
    %646 = vmatpush1.msra.mxu0 %v584
    %647 = vmatprep.subr.mxu0 0.0
    %648 = vmatpush1.msra.mxu0 %v585
    %649 = vmatprep.subr.mxu0 0.0
    %650 = vmatpush1.msra.mxu0 %v586
    %651 = vmatprep.mubr.f32.mxu0 %v554
    %652 = vmatmul.mubr.f32.gmra.mrb[0].mxu0 %v553
    %v653 = vpop.f32.mrb[0].mxu0
    %v654 = vadd.f32 0.0, %v653
    %v655 = vpop.f32.mrb[0].mxu0
    %656 = vdwg.mxu0
    %657 = vst [vmem:[%s7] sm:$0x3] %v654
    // Predicated region
    $region46: #{binary_encoding_forward.1} parent=1 // pred_check
      _
    $region47: #{binary_encoding_forward.1} parent=1 // pred_check_branch
      %659 = sbr.rel (0) target = $region49
    $region48: #{binary_encoding_forward.1} parent=1 // pred_region
      _
    $region49: #{binary_encoding_forward.1} parent=1 // pred_fallthru
      _
    // Predicated region
    $region50: #{binary_encoding_forward.1} parent=1 // pred_check
      _
    $region51: #{binary_encoding_forward.1} parent=1 // pred_check_branch
      %661 = sbr.rel (0) target = $region53
    $region52: #{binary_encoding_forward.1} parent=1 // pred_region
      _
    $region53: #{binary_encoding_forward.1} parent=1 // pred_fallthru
      _
    %662 = vsyncpa [#allocation3], 1
    %663 = vsyncpa [#allocation5], 1
    %664 = vsyncpa [#allocation8], 1

</llo_original>
